<compile_context>
chip_gen: v5e
topology: v5e:2x2
jax: 0.10.0
libtpu: 0.0.40
codegen_flags: <defaults>
</compile_context>

<pallas_src>
import math
import functools

import jax
import jax.numpy as jnp
from jax import lax
from jax.experimental import pallas as pl
from jax.experimental.pallas import tpu as pltpu

MAX_RES = 15.0
MIN_RES = 15.0 / 2000.0
DIV_FACTOR = 4

N_FREQUENCIES = int(math.log(MAX_RES / MIN_RES, DIV_FACTOR)) + 1          # = 6
# Python floats -> baked into the kernel as scalar immediates.
FREQUENCIES = tuple(
    2.0 * math.pi * (float(DIV_FACTOR) ** k) / MAX_RES
    for k in range(N_FREQUENCIES)
)
EMB_DIM = 2 * N_FREQUENCIES                                               # = 12

# Consecutive frequencies differ by exactly DIV_FACTOR (a power of two), so
# each derived frequency needs log2(DIV_FACTOR) double-angle steps.
_N_DOUBLINGS = int(round(math.log2(DIV_FACTOR)))
assert 2 ** _N_DOUBLINGS == DIV_FACTOR

LANES = 128
SUBLANES = 8
EPS = 1e-8
_VMEM_LIMIT_BYTES = 48 * 1024 * 1024   # covers 1024-row tiles double-buffered;
                                        # still < v7x's 64 MiB physical VMEM.


def _sinusoid_kernel(x_ref, o_ref, *, freqs, anchor_every):
    """x_ref: (tile_rows, 128) f32 slab of squared distances (lane-dense).
    o_ref: (2*F, tile_rows, 128) frequency-major output."""
    # jnp.sqrt lowers via the EUP (rsqrt + Newton) -> no VALU-slot cost.
    xs = jnp.sqrt(x_ref[...] + EPS)
    n_freq = len(freqs)
    s = c = None
    for f, w in enumerate(freqs):
        if f % anchor_every == 0:
            ang = xs * w                      # scalar-immediate multiply
            s = jnp.sin(ang)
            c = jnp.cos(ang)
        else:
            # Next frequency = previous * DIV_FACTOR: cheap VALU double-angle
            # steps instead of two more polynomial transcendentals.
            for _ in range(_N_DOUBLINGS):
                s, c = 2.0 * (s * c), c * c - s * s
        o_ref[f] = s.astype(o_ref.dtype)          # full-width, unmasked stores
        o_ref[n_freq + f] = c.astype(o_ref.dtype)


def _round_up(a, b):
    return ((a + b - 1) // b) * b


def _embedding_slab(x_flat, n, *, max_tile_rows, exact, out_dtype):
    """Run the kernel; returns (freq-major slab [2F, rows_pad, 128], n_pad)."""
    rows = pl.cdiv(n, LANES)
    if rows <= max_tile_rows:
        # Single block: no padding-only extra grid step on v5e/v6e.
        n_blocks = 1
        tile_rows = _round_up(rows, SUBLANES)
    else:
        # Even block count keeps the v7x two-TensorCore split balanced; on
        # single-core v5e/v6e the grid is a serial loop either way.
        n_blocks = _round_up(pl.cdiv(rows, max_tile_rows), 2)
        tile_rows = _round_up(pl.cdiv(rows, n_blocks), SUBLANES)
    rows_pad = n_blocks * tile_rows
    n_pad = rows_pad * LANES

    # Zero padding is numerically safe through sqrt(x + 1e-8); the padded
    # region is sliced off by the callers.
    x_slab = jnp.pad(x_flat, (0, n_pad - n)).reshape(rows_pad, LANES)

    kernel = functools.partial(
        _sinusoid_kernel,
        freqs=FREQUENCIES,
        anchor_every=1 if exact else 2,
    )

    out_bytes = jnp.dtype(out_dtype).itemsize
    transc_per_elem = (2 * N_FREQUENCIES if exact else N_FREQUENCIES) + 1
    cost = pl.CostEstimate(
        flops=64 * n_pad,
        transcendentals=transc_per_elem * n_pad,
        bytes_accessed=n_pad * 4 + n_pad * EMB_DIM * out_bytes,
    )

    return pl.pallas_call(
        kernel,
        out_shape=jax.ShapeDtypeStruct((EMB_DIM, rows_pad, LANES), out_dtype),
        grid_spec=pltpu.PrefetchScalarGridSpec(
            num_scalar_prefetch=0,
            grid=(n_blocks,),
            in_specs=[pl.BlockSpec((tile_rows, LANES), lambda i: (i, 0))],
            out_specs=pl.BlockSpec((EMB_DIM, tile_rows, LANES),
                                   lambda i: (0, i, 0)),
        ),
        compiler_params=pltpu.CompilerParams(
            dimension_semantics=("parallel",),
            vmem_limit_bytes=_VMEM_LIMIT_BYTES,
        ),
        cost_estimate=cost,
    )(x_slab), n_pad


def sinusoids_embedding_freq_major(x, *, max_tile_rows=1024, exact=False,
                                   out_dtype=jnp.float32):
    """x: f32[N, 1] or f32[N] -> f32[2*F, N] frequency-major (sin rows 0..5,
    cos rows 6..11).  Preferred form for consumers that can contract the
    12-dim directly: it avoids the [N, 12] transpose entirely."""
    x_flat = jnp.reshape(x, (-1,))
    n = x_flat.shape[0]
    slab, n_pad = _embedding_slab(x_flat, n, max_tile_rows=max_tile_rows,
                                  exact=exact, out_dtype=out_dtype)
    out = slab.reshape(EMB_DIM, n_pad)[:, :n]
    return lax.stop_gradient(out)            # mirrors emb.detach()


def sinusoids_embedding(x, *, max_tile_rows=1024, exact=False,
                        out_dtype=jnp.float32):
    """x: f32[N, 1] (or flat f32[N]) -> f32[N, 2*F] = [sin | cos].

    Matches SinusoidsEmbeddingNew.forward.  The [N, 12] contract forces one
    XLA transpose of the frequency-major kernel output (layout plumbing, not
    compute); use sinusoids_embedding_freq_major() or fuse into the consumer
    to avoid it."""
    return sinusoids_embedding_freq_major(
        x, max_tile_rows=max_tile_rows, exact=exact, out_dtype=out_dtype).T


def sinusoids_embedding_ref(x):
    """Pure-JAX reference mirroring the PyTorch forward (x: [N, 1])."""
    freqs = jnp.asarray(FREQUENCIES, dtype=jnp.float32)
    xs = jnp.sqrt(x + EPS)
    emb = xs * freqs[None, :]
    return jnp.concatenate([jnp.sin(emb), jnp.cos(emb)], axis=-1)


if __name__ == "__main__":
    key = jax.random.PRNGKey(0)
    # Squared pairwise distances, [N, 1], as produced by the EGNN edge model.
    # Kept in [0, 1): the highest frequency (~429 rad^-1) amplifies any f32
    # ulp difference in the angle, so the comparison tolerance below is set by
    # angle * eps (~3e-5 worst case), not by the kernel structure.
    x = jax.random.uniform(key, (64, 1), dtype=jnp.float32,
                           minval=0.0, maxval=1.0)

    ref = sinusoids_embedding_ref(x)

    # Fast path: anchored double-angle recurrence (6 polynomials instead of 12).
    out = jax.block_until_ready(sinusoids_embedding(x))
    assert out.shape == (64, EMB_DIM), out.shape
    assert jnp.allclose(out, ref, atol=1e-4, rtol=0.0), (
        "fast path mismatch, max |diff| = %g"
        % float(jnp.max(jnp.abs(out - ref))))

    # Exact path: one polynomial sin/cos per frequency (tighter tolerance).
    out_exact = jax.block_until_ready(sinusoids_embedding(x, exact=True))
    assert jnp.allclose(out_exact, ref, atol=5e-5, rtol=0.0), (
        "exact path mismatch, max |diff| = %g"
        % float(jnp.max(jnp.abs(out_exact - ref))))

    print("KERNEL_OK")
</pallas_src>

<mosaic_0001>
module attributes {stable_mosaic.version = 11 : i64} {
  func.func @_sinusoid_kernel(%arg0: i32, %arg1: memref<8x128xf32, #tpu.memory_space<vmem>>, %arg2: memref<12x8x128xf32, #tpu.memory_space<vmem>>) attributes {dimension_semantics = [#tpu.dimension_semantics<parallel>], iteration_bounds = array<i64: 1>, scalar_prefetch = 0 : i64, scratch_operands = 0 : i64, tpu.core_type = #tpu.core_type<tc>, window_params = [{transform_indices = @transform_0, window_bounds = array<i64: 8, 128>}, {transform_indices = @transform_1, window_bounds = array<i64: 12, 8, 128>}]} {
    %c0 = arith.constant 0 : index
    %c0_0 = arith.constant 0 : index
    %0 = vector.load %arg1[%c0, %c0_0] : memref<8x128xf32, #tpu.memory_space<vmem>>, vector<8x128xf32>
    %cst = arith.constant 9.99999993E-9 : f32
    %1 = vector.broadcast %cst : f32 to vector<8x128xf32>
    %2 = arith.addf %0, %1 : vector<8x128xf32>
    %3 = math.sqrt %2 : vector<8x128xf32>
    %cst_1 = arith.constant 0.418879032 : f32
    %4 = vector.broadcast %cst_1 : f32 to vector<8x128xf32>
    %5 = arith.mulf %3, %4 : vector<8x128xf32>
    %6 = math.sin %5 : vector<8x128xf32>
    %7 = math.cos %5 : vector<8x128xf32>
    %c0_2 = arith.constant 0 : index
    %c0_3 = arith.constant 0 : index
    %c0_4 = arith.constant 0 : index
    %8 = vector.load %arg2[%c0_2, %c0_3, %c0_4] : memref<12x8x128xf32, #tpu.memory_space<vmem>>, vector<1x8x128xf32>
    %9 = vector.shape_cast %8 : vector<1x8x128xf32> to vector<8x128xf32>
    %10 = vector.shape_cast %6 : vector<8x128xf32> to vector<1x8x128xf32>
    tpu.vector_store %arg2[%c0_2, %c0_3, %c0_4], %10 {strides = array<i32>} : memref<12x8x128xf32, #tpu.memory_space<vmem>>, vector<1x8x128xf32>,
    %c6 = arith.constant 6 : index
    %c0_5 = arith.constant 0 : index
    %c0_6 = arith.constant 0 : index
    %11 = vector.load %arg2[%c6, %c0_5, %c0_6] : memref<12x8x128xf32, #tpu.memory_space<vmem>>, vector<1x8x128xf32>
    %12 = vector.shape_cast %11 : vector<1x8x128xf32> to vector<8x128xf32>
    %13 = vector.shape_cast %7 : vector<8x128xf32> to vector<1x8x128xf32>
    tpu.vector_store %arg2[%c6, %c0_5, %c0_6], %13 {strides = array<i32>} : memref<12x8x128xf32, #tpu.memory_space<vmem>>, vector<1x8x128xf32>,
    %14 = arith.mulf %6, %7 : vector<8x128xf32>
    %cst_7 = arith.constant 2.000000e+00 : f32
    %15 = vector.broadcast %cst_7 : f32 to vector<8x128xf32>
    %16 = arith.mulf %15, %14 : vector<8x128xf32>
    %17 = arith.mulf %7, %7 : vector<8x128xf32>
    %18 = arith.mulf %6, %6 : vector<8x128xf32>
    %19 = arith.subf %17, %18 : vector<8x128xf32>
    %20 = arith.mulf %16, %19 : vector<8x128xf32>
    %cst_8 = arith.constant 2.000000e+00 : f32
    %21 = vector.broadcast %cst_8 : f32 to vector<8x128xf32>
    %22 = arith.mulf %21, %20 : vector<8x128xf32>
    %23 = arith.mulf %19, %19 : vector<8x128xf32>
    %24 = arith.mulf %16, %16 : vector<8x128xf32>
    %25 = arith.subf %23, %24 : vector<8x128xf32>
    %c1 = arith.constant 1 : index
    %c0_9 = arith.constant 0 : index
    %c0_10 = arith.constant 0 : index
    %26 = vector.load %arg2[%c1, %c0_9, %c0_10] : memref<12x8x128xf32, #tpu.memory_space<vmem>>, vector<1x8x128xf32>
    %27 = vector.shape_cast %26 : vector<1x8x128xf32> to vector<8x128xf32>
    %28 = vector.shape_cast %22 : vector<8x128xf32> to vector<1x8x128xf32>
    tpu.vector_store %arg2[%c1, %c0_9, %c0_10], %28 {strides = array<i32>} : memref<12x8x128xf32, #tpu.memory_space<vmem>>, vector<1x8x128xf32>,
    %c7 = arith.constant 7 : index
    %c0_11 = arith.constant 0 : index
    %c0_12 = arith.constant 0 : index
    %29 = vector.load %arg2[%c7, %c0_11, %c0_12] : memref<12x8x128xf32, #tpu.memory_space<vmem>>, vector<1x8x128xf32>
    %30 = vector.shape_cast %29 : vector<1x8x128xf32> to vector<8x128xf32>
    %31 = vector.shape_cast %25 : vector<8x128xf32> to vector<1x8x128xf32>
    tpu.vector_store %arg2[%c7, %c0_11, %c0_12], %31 {strides = array<i32>} : memref<12x8x128xf32, #tpu.memory_space<vmem>>, vector<1x8x128xf32>,
    %cst_13 = arith.constant 6.70206451 : f32
    %32 = vector.broadcast %cst_13 : f32 to vector<8x128xf32>
    %33 = arith.mulf %3, %32 : vector<8x128xf32>
    %34 = math.sin %33 : vector<8x128xf32>
    %35 = math.cos %33 : vector<8x128xf32>
    %c2 = arith.constant 2 : index
    %c0_14 = arith.constant 0 : index
    %c0_15 = arith.constant 0 : index
    %36 = vector.load %arg2[%c2, %c0_14, %c0_15] : memref<12x8x128xf32, #tpu.memory_space<vmem>>, vector<1x8x128xf32>
    %37 = vector.shape_cast %36 : vector<1x8x128xf32> to vector<8x128xf32>
    %38 = vector.shape_cast %34 : vector<8x128xf32> to vector<1x8x128xf32>
    tpu.vector_store %arg2[%c2, %c0_14, %c0_15], %38 {strides = array<i32>} : memref<12x8x128xf32, #tpu.memory_space<vmem>>, vector<1x8x128xf32>,
    %c8 = arith.constant 8 : index
    %c0_16 = arith.constant 0 : index
    %c0_17 = arith.constant 0 : index
    %39 = vector.load %arg2[%c8, %c0_16, %c0_17] : memref<12x8x128xf32, #tpu.memory_space<vmem>>, vector<1x8x128xf32>
    %40 = vector.shape_cast %39 : vector<1x8x128xf32> to vector<8x128xf32>
    %41 = vector.shape_cast %35 : vector<8x128xf32> to vector<1x8x128xf32>
    tpu.vector_store %arg2[%c8, %c0_16, %c0_17], %41 {strides = array<i32>} : memref<12x8x128xf32, #tpu.memory_space<vmem>>, vector<1x8x128xf32>,
    %42 = arith.mulf %34, %35 : vector<8x128xf32>
    %cst_18 = arith.constant 2.000000e+00 : f32
    %43 = vector.broadcast %cst_18 : f32 to vector<8x128xf32>
    %44 = arith.mulf %43, %42 : vector<8x128xf32>
    %45 = arith.mulf %35, %35 : vector<8x128xf32>
    %46 = arith.mulf %34, %34 : vector<8x128xf32>
    %47 = arith.subf %45, %46 : vector<8x128xf32>
    %48 = arith.mulf %44, %47 : vector<8x128xf32>
    %cst_19 = arith.constant 2.000000e+00 : f32
    %49 = vector.broadcast %cst_19 : f32 to vector<8x128xf32>
    %50 = arith.mulf %49, %48 : vector<8x128xf32>
    %51 = arith.mulf %47, %47 : vector<8x128xf32>
    %52 = arith.mulf %44, %44 : vector<8x128xf32>
    %53 = arith.subf %51, %52 : vector<8x128xf32>
    %c3 = arith.constant 3 : index
    %c0_20 = arith.constant 0 : index
    %c0_21 = arith.constant 0 : index
    %54 = vector.load %arg2[%c3, %c0_20, %c0_21] : memref<12x8x128xf32, #tpu.memory_space<vmem>>, vector<1x8x128xf32>
    %55 = vector.shape_cast %54 : vector<1x8x128xf32> to vector<8x128xf32>
    %56 = vector.shape_cast %50 : vector<8x128xf32> to vector<1x8x128xf32>
    tpu.vector_store %arg2[%c3, %c0_20, %c0_21], %56 {strides = array<i32>} : memref<12x8x128xf32, #tpu.memory_space<vmem>>, vector<1x8x128xf32>,
    %c9 = arith.constant 9 : index
    %c0_22 = arith.constant 0 : index
    %c0_23 = arith.constant 0 : index
    %57 = vector.load %arg2[%c9, %c0_22, %c0_23] : memref<12x8x128xf32, #tpu.memory_space<vmem>>, vector<1x8x128xf32>
    %58 = vector.shape_cast %57 : vector<1x8x128xf32> to vector<8x128xf32>
    %59 = vector.shape_cast %53 : vector<8x128xf32> to vector<1x8x128xf32>
    tpu.vector_store %arg2[%c9, %c0_22, %c0_23], %59 {strides = array<i32>} : memref<12x8x128xf32, #tpu.memory_space<vmem>>, vector<1x8x128xf32>,
    %cst_24 = arith.constant 107.233032 : f32
    %60 = vector.broadcast %cst_24 : f32 to vector<8x128xf32>
    %61 = arith.mulf %3, %60 : vector<8x128xf32>
    %62 = math.sin %61 : vector<8x128xf32>
    %63 = math.cos %61 : vector<8x128xf32>
    %c4 = arith.constant 4 : index
    %c0_25 = arith.constant 0 : index
    %c0_26 = arith.constant 0 : index
    %64 = vector.load %arg2[%c4, %c0_25, %c0_26] : memref<12x8x128xf32, #tpu.memory_space<vmem>>, vector<1x8x128xf32>
    %65 = vector.shape_cast %64 : vector<1x8x128xf32> to vector<8x128xf32>
    %66 = vector.shape_cast %62 : vector<8x128xf32> to vector<1x8x128xf32>
    tpu.vector_store %arg2[%c4, %c0_25, %c0_26], %66 {strides = array<i32>} : memref<12x8x128xf32, #tpu.memory_space<vmem>>, vector<1x8x128xf32>,
    %c10 = arith.constant 10 : index
    %c0_27 = arith.constant 0 : index
    %c0_28 = arith.constant 0 : index
    %67 = vector.load %arg2[%c10, %c0_27, %c0_28] : memref<12x8x128xf32, #tpu.memory_space<vmem>>, vector<1x8x128xf32>
    %68 = vector.shape_cast %67 : vector<1x8x128xf32> to vector<8x128xf32>
    %69 = vector.shape_cast %63 : vector<8x128xf32> to vector<1x8x128xf32>
    tpu.vector_store %arg2[%c10, %c0_27, %c0_28], %69 {strides = array<i32>} : memref<12x8x128xf32, #tpu.memory_space<vmem>>, vector<1x8x128xf32>,
    %70 = arith.mulf %62, %63 : vector<8x128xf32>
    %cst_29 = arith.constant 2.000000e+00 : f32
    %71 = vector.broadcast %cst_29 : f32 to vector<8x128xf32>
    %72 = arith.mulf %71, %70 : vector<8x128xf32>
    %73 = arith.mulf %63, %63 : vector<8x128xf32>
    %74 = arith.mulf %62, %62 : vector<8x128xf32>
    %75 = arith.subf %73, %74 : vector<8x128xf32>
    %76 = arith.mulf %72, %75 : vector<8x128xf32>
    %cst_30 = arith.constant 2.000000e+00 : f32
    %77 = vector.broadcast %cst_30 : f32 to vector<8x128xf32>
    %78 = arith.mulf %77, %76 : vector<8x128xf32>
    %79 = arith.mulf %75, %75 : vector<8x128xf32>
    %80 = arith.mulf %72, %72 : vector<8x128xf32>
    %81 = arith.subf %79, %80 : vector<8x128xf32>
    %c5 = arith.constant 5 : index
    %c0_31 = arith.constant 0 : index
    %c0_32 = arith.constant 0 : index
    %82 = vector.load %arg2[%c5, %c0_31, %c0_32] : memref<12x8x128xf32, #tpu.memory_space<vmem>>, vector<1x8x128xf32>
    %83 = vector.shape_cast %82 : vector<1x8x128xf32> to vector<8x128xf32>
    %84 = vector.shape_cast %78 : vector<8x128xf32> to vector<1x8x128xf32>
    tpu.vector_store %arg2[%c5, %c0_31, %c0_32], %84 {strides = array<i32>} : memref<12x8x128xf32, #tpu.memory_space<vmem>>, vector<1x8x128xf32>,
    %c11 = arith.constant 11 : index
    %c0_33 = arith.constant 0 : index
    %c0_34 = arith.constant 0 : index
    %85 = vector.load %arg2[%c11, %c0_33, %c0_34] : memref<12x8x128xf32, #tpu.memory_space<vmem>>, vector<1x8x128xf32>
    %86 = vector.shape_cast %85 : vector<1x8x128xf32> to vector<8x128xf32>
    %87 = vector.shape_cast %81 : vector<8x128xf32> to vector<1x8x128xf32>
    tpu.vector_store %arg2[%c11, %c0_33, %c0_34], %87 {strides = array<i32>} : memref<12x8x128xf32, #tpu.memory_space<vmem>>, vector<1x8x128xf32>,
    return
  }
  func.func @transform_0(%arg0: i32) -> (i32, i32) {
    %c0_i32 = arith.constant 0 : i32
    %c0_i32_0 = arith.constant 0 : i32
    return %arg0, %c0_i32 : i32, i32
  }
  func.func @transform_1(%arg0: i32) -> (i32, i32, i32) {
    %c0_i32 = arith.constant 0 : i32
    %c0_i32_0 = arith.constant 0 : i32
    %c0_i32_1 = arith.constant 0 : i32
    return %c0_i32, %arg0, %c0_i32_0 : i32, i32, i32
  }
}

</mosaic_0001>

<llo_original>
// kernel: tpu_custom_call.1
$region0: #{tpu_custom_call.1}
  #allocation0 [shape = 'u32[]', space=smem, size = 0x4, offset = 0x4, fixed_abs, tag = 'smem constant byte address 0x4 - core index']
  #allocation1 [shape = 'u32[72,128]{1,0:T(1,128)}', space=vmem, size = 0x9000, scoped, tag = 'internal scratch']
  %s0 = inlined_call_operand.hbm [shape: f32[8,128], index: 0, kind: input, shape index: {}]
  %s1 = inlined_call_operand.hbm [shape: f32[12,8,128], index: 1, kind: output, shape index: {}]
  %s2 = sld [smem:[#allocation0]]
  $region18: #{tpu_custom_call.1} parent=0
    _
  %s4 = ssub.s32 1, %s2
  %s5 = scalar_select 0, %s4, %s2
  $region1: #{tpu_custom_call.1} parent=0
    #allocation2 [shape = 'u8[4096]{0}', space=vmem, size = 0x1000, scoped, tag = 'input window, operand 0, single buffered']
    #allocation3 [shape = 's32[1]{0}', space=sflag, size = 0x4, scoped, tag = 'scoped memory for tpu_custom_call.1']
    #allocation4 [shape = 's32[1]{0}', space=sflag, size = 0x4, scoped, tag = 'scoped memory for tpu_custom_call.1']
    #allocation5 [shape = 'u8[49152]{0}', space=vmem, size = 0xc000, scoped, tag = 'output window, operand 0, single buffered']
    %6 = vsyncpa [#allocation3], 0
    %7 = vsyncpa [#allocation4], 0
    // Predicated region
    $region2: #{tpu_custom_call.1} parent=1 // pred_check
      _
    $region3: #{tpu_custom_call.1} parent=1 // pred_check_branch
      %9 = sbr.rel (0) target = $region5
    $region4: #{tpu_custom_call.1} parent=1 // pred_region
      %11 = vsyncadd [#allocation3], 0
      %s13 = sshll.u32 %s0, 4
      %s14 = int_to_ptr.hbm [resolvable:$true] %s13
      %s15 = sshll.u32 [#allocation2], 4
      %s16 = int_to_ptr.vmem [resolvable:$true] %s15
      %18 = dma.hbm_to_vmem [thread:$0]  %s14, 128, %s16, [#allocation3]
    $region5: #{tpu_custom_call.1} parent=1 // pred_fallthru
      _
    // Predicated region
    $region6: #{tpu_custom_call.1} parent=1 // pred_check
      _
    $region7: #{tpu_custom_call.1} parent=1 // pred_check_branch
      %20 = sbr.rel (0) target = $region9
    $region8: #{tpu_custom_call.1} parent=1 // pred_region
      %22 = dma.done [#allocation3], 128
    $region9: #{tpu_custom_call.1} parent=1 // pred_fallthru
      _
    %v23 = vld [vmem:[#allocation2] sm:$0xff]
    %v24 = vadd.f32 %v23, 1e-08
    %v25 = vrsqrt.pop %v24
    %v26 = vmul.f32 %v25, %v24
    %v27 = vmul.f32 %v26, %v25
    %v28 = vmul.f32 0.5, %v27
    %v29 = vsub.f32 1.5, %v28
    %v30 = vmul.f32 %v25, %v29
    %v31 = vmul.f32 %v24, %v30
    %vm32 = vcmp.eq.f32.partialorder %v24, inf
    %v33 = vsel %vm32, %v24, %v31
    %vm34 = vcmp.eq.f32.partialorder %v24, 0.0
    %v35 = vand.u32 %v24, 2147483648
    %v36 = vsel %vm34, %v35, %v33
    %v37 = vmul.f32 %v36, 0.41887903
    %v38 = vand.u32 2147483647, %v37
    %vm39 = vcmp.le.f32.partialorder %v38, 0.7853982
    %vm40 = vcmp.lt.s32.totalorder %v37, 0
    %v41 = vand.u32 %v37, 2139095040
    %v42 = vshrl.u32 %v41, 23
    %v43 = vsub.s32 %v42, 127
    %v44 = vand.u32 2147483647, %v37
    %v45 = vand.u32 %v44, 8388607
    %v46 = vor.u32 %v45, 8388608
    %v47 = vsub.s32 0, %v46
    %v48 = vadd.s32 %v43, 1
    %vm49 = vcmp.gt.s32.totalorder %v48, 0
    %v50 = vsel %vm49, %v48, 0
    %v51 = vshrl.u32 %v50, 5
    %v52 = vand.u32 %v50, 31
    %v53 = vsub.s32 32, %v52
    %v54 = vshrl.u32 683565275, %v53
    %v55 = vshll.u32 683565275, %v52
    %v56 = vshrl.u32 2475754826, %v53
    %v57 = vor.u32 %v55, %v56
    %v58 = vshll.u32 2475754826, %v52
    %v59 = vshrl.u32 2131351028, %v53
    %v60 = vor.u32 %v58, %v59
    %v61 = vshll.u32 2131351028, %v52
    %v62 = vshrl.u32 2102212464, %v53
    %v63 = vor.u32 %v61, %v62
    %v64 = vshll.u32 2102212464, %v52
    %v65 = vshrl.u32 920167782, %v53
    %v66 = vor.u32 %v64, %v65
    %v67 = vshll.u32 920167782, %v52
    %v68 = vshrl.u32 1326507024, %v53
    %v69 = vor.u32 %v67, %v68
    %vm70 = vcmp.lt.s32.totalorder %v51, 1
    %vm71 = vcmp.lt.s32.totalorder %v51, 2
    %vm72 = vcmp.lt.s32.totalorder %v51, 3
    %vm73 = vcmp.lt.s32.totalorder %v51, 4
    %v74 = vsel %vm70, %v54, %v57
    %v75 = vsel %vm73, %v63, 2102212464
    %v76 = vsel %vm72, %v60, %v75
    %v77 = vsel %vm71, %v74, %v76
    %v78 = vsel %vm70, %v57, %v60
    %v79 = vsel %vm73, %v66, 920167782
    %v80 = vsel %vm72, %v63, %v79
    %v81 = vsel %vm71, %v78, %v80
    %v82 = vsel %vm70, %v60, %v63
    %v83 = vsel %vm73, %v69, 1326507024
    %v84 = vsel %vm72, %v66, %v83
    %v85 = vsel %vm71, %v82, %v84
    %v86 = vshll.u32 %v46, 8
    %v87 = vand.u32 %v86, 65535
    %v88 = vshrl.u32 %v86, 16
    %v89 = vand.u32 %v85, 65535
    %v90 = vshrl.u32 %v85, 16
    %v91 = vmul.u32 %v87, %v89
    %v92 = vmul.u32 %v87, %v90
    %v93 = vmul.u32 %v88, %v89
    %v94 = vmul.u32 %v88, %v90
    %v95 = vshll.u32 %v92, 16
    %v96 = vshrl.u32 %v92, 16
    %v97 = vshll.u32 %v93, 16
    %v98 = vshrl.u32 %v93, 16
    %vm99 = vc.u32 %v91, %v95
    %v100 = vsel %vm99, 1, 0
    %v101 = vadd.s32 %v91, %v95
    %v102 = vadd.s32 %v94, %v100
    %vm103 = vc.u32 %v101, %v97
    %v104 = vsel %vm103, 1, 0
    %v105 = vadd.s32 %v101, %v97
    %v106 = vadd.s32 %v102, %v104
    %v107 = vadd.s32 %v106, %v96
    %v108 = vadd.s32 %v107, %v98
    %v109 = vand.u32 %v86, 65535
    %v110 = vshrl.u32 %v86, 16
    %v111 = vand.u32 %v81, 65535
    %v112 = vshrl.u32 %v81, 16
    %v113 = vmul.u32 %v109, %v111
    %v114 = vmul.u32 %v109, %v112
    %v115 = vmul.u32 %v110, %v111
    %v116 = vmul.u32 %v110, %v112
    %v117 = vshll.u32 %v114, 16
    %v118 = vshrl.u32 %v114, 16
    %v119 = vshll.u32 %v115, 16
    %v120 = vshrl.u32 %v115, 16
    %vm121 = vc.u32 %v113, %v117
    %v122 = vsel %vm121, 1, 0
    %v123 = vadd.s32 %v113, %v117
    %v124 = vadd.s32 %v116, %v122
    %vm125 = vc.u32 %v123, %v119
    %v126 = vsel %vm125, 1, 0
    %v127 = vadd.s32 %v123, %v119
    %v128 = vadd.s32 %v124, %v126
    %v129 = vadd.s32 %v128, %v118
    %v130 = vadd.s32 %v129, %v120
    %v131 = vmul.u32 %v86, %v77
    %v132 = vadd.s32 %v108, %v127
    %vm133 = vc.u32 %v108, %v127
    %v134 = vadd.s32 %v130, 1
    %v135 = vsel %vm133, %v134, %v130
    %v136 = vadd.s32 %v131, %v135
    %v137 = vadd.s32 %v136, 536870912
    %v138 = vshrl.u32 %v137, 30
    %v139 = vshll.u32 %v138, 30
    %v140 = vsub.s32 %v136, %v139
    %vm141 = vcmp.lt.s32.totalorder %v140, 0
    %v142 = vsub.s32 0, %v140
    %v143 = vsel %vm141, %v142, %v140
    %v144 = vclz %v143
    %v145 = vsub.s32 %v144, 2
    %vm146 = vcmp.gt.s32.totalorder 0, %v145
    %v147 = vsel %vm146, 0, %v145
    %v148 = vsub.s32 32, %v147
    %v149 = vshll.u32 %v140, %v147
    %v150 = vshrl.u32 %v132, %v148
    %v151 = vor.u32 %v149, %v150
    %v152 = vsub.s32 4294967266, %v147
    %v153 = vadd.s32 %v152, 127
    %v154 = vshll.u32 %v153, 23
    %v155 = vor.u32 4788187, %v154
    %v156 = vand.u32 2147483647, %v155
    %v158 = vcvt.s32.f32 %v151
    %v159 = vmul.f32 %v158, %v156
    %v160 = vxor.u32 %v159, 2147483648
    %v161 = vsel %vm40, %v160, %v159
    %v162 = vsub.s32 4, %v138
    %v163 = vsel %vm40, %v162, %v138
    %v164 = vsel %vm39, %v37, %v161
    %v165 = vsel %vm39, 0, %v163
    %v166 = vmul.f32 %v164, %v164
    %v167 = vmul.f32 %v166, -0.001358992
    %v168 = vadd.f32 %v167, 0.041655596
    %v169 = vmul.f32 %v166, %v168
    %v170 = vadd.f32 %v169, -0.4999988
    %v171 = vmul.f32 %v166, %v170
    %v172 = vadd.f32 1.0, %v171
    %v173 = vmul.f32 %v164, %v164
    %v174 = vmul.f32 %v173, -0.00019511016
    %v175 = vadd.f32 %v174, 0.008332121
    %v176 = vmul.f32 %v173, %v175
    %v177 = vadd.f32 %v176, -0.16666654
    %v178 = vmul.f32 %v173, %v177
    %v179 = vadd.f32 %v178, 1.0
    %v180 = vmul.f32 %v179, %v164
    %vm181 = vweird.f32 %v37
    %v182 = vadd.s32 %v165, 3
    %v183 = vand.u32 %v182, 3
    %vm184 = vcmp.lt.s32.totalorder %v183, 2
    %vm185 = vcmp.eq.s32.totalorder %v183, 0
    %v186 = vxor.u32 %v180, 2147483648
    %v187 = vsel %vm185, %v172, %v186
    %vm188 = vcmp.eq.s32.totalorder %v183, 2
    %v189 = vxor.u32 %v172, 2147483648
    %v190 = vsel %vm188, %v189, %v180
    %v191 = vsel %vm184, %v187, %v190
    %v192 = vsel %vm181, nan, %v191
    %v193 = vand.u32 2147483647, %v37
    %vm194 = vcmp.le.f32.partialorder %v193, 0.7853982
    %vm195 = vcmp.lt.s32.totalorder %v37, 0
    %v196 = vand.u32 %v37, 2139095040
    %v197 = vshrl.u32 %v196, 23
    %v198 = vsub.s32 %v197, 127
    %v199 = vand.u32 2147483647, %v37
    %v200 = vand.u32 %v199, 8388607
    %v201 = vor.u32 %v200, 8388608
    %v202 = vsub.s32 0, %v201
    %v203 = vadd.s32 %v198, 1
    %vm204 = vcmp.gt.s32.totalorder %v203, 0
    %v205 = vsel %vm204, %v203, 0
    %v206 = vshrl.u32 %v205, 5
    %v207 = vand.u32 %v205, 31
    %v208 = vsub.s32 32, %v207
    %v209 = vshrl.u32 683565275, %v208
    %v210 = vshll.u32 683565275, %v207
    %v211 = vshrl.u32 2475754826, %v208
    %v212 = vor.u32 %v210, %v211
    %v213 = vshll.u32 2475754826, %v207
    %v214 = vshrl.u32 2131351028, %v208
    %v215 = vor.u32 %v213, %v214
    %v216 = vshll.u32 2131351028, %v207
    %v217 = vshrl.u32 2102212464, %v208
    %v218 = vor.u32 %v216, %v217
    %v219 = vshll.u32 2102212464, %v207
    %v220 = vshrl.u32 920167782, %v208
    %v221 = vor.u32 %v219, %v220
    %v222 = vshll.u32 920167782, %v207
    %v223 = vshrl.u32 1326507024, %v208
    %v224 = vor.u32 %v222, %v223
    %vm225 = vcmp.lt.s32.totalorder %v206, 1
    %vm226 = vcmp.lt.s32.totalorder %v206, 2
    %vm227 = vcmp.lt.s32.totalorder %v206, 3
    %vm228 = vcmp.lt.s32.totalorder %v206, 4
    %v229 = vsel %vm225, %v209, %v212
    %v230 = vsel %vm228, %v218, 2102212464
    %v231 = vsel %vm227, %v215, %v230
    %v232 = vsel %vm226, %v229, %v231
    %v233 = vsel %vm225, %v212, %v215
    %v234 = vsel %vm228, %v221, 920167782
    %v235 = vsel %vm227, %v218, %v234
    %v236 = vsel %vm226, %v233, %v235
    %v237 = vsel %vm225, %v215, %v218
    %v238 = vsel %vm228, %v224, 1326507024
    %v239 = vsel %vm227, %v221, %v238
    %v240 = vsel %vm226, %v237, %v239
    %v241 = vshll.u32 %v201, 8
    %v242 = vand.u32 %v241, 65535
    %v243 = vshrl.u32 %v241, 16
    %v244 = vand.u32 %v240, 65535
    %v245 = vshrl.u32 %v240, 16
    %v246 = vmul.u32 %v242, %v244
    %v247 = vmul.u32 %v242, %v245
    %v248 = vmul.u32 %v243, %v244
    %v249 = vmul.u32 %v243, %v245
    %v250 = vshll.u32 %v247, 16
    %v251 = vshrl.u32 %v247, 16
    %v252 = vshll.u32 %v248, 16
    %v253 = vshrl.u32 %v248, 16
    %vm254 = vc.u32 %v246, %v250
    %v255 = vsel %vm254, 1, 0
    %v256 = vadd.s32 %v246, %v250
    %v257 = vadd.s32 %v249, %v255
    %vm258 = vc.u32 %v256, %v252
    %v259 = vsel %vm258, 1, 0
    %v260 = vadd.s32 %v256, %v252
    %v261 = vadd.s32 %v257, %v259
    %v262 = vadd.s32 %v261, %v251
    %v263 = vadd.s32 %v262, %v253
    %v264 = vand.u32 %v241, 65535
    %v265 = vshrl.u32 %v241, 16
    %v266 = vand.u32 %v236, 65535
    %v267 = vshrl.u32 %v236, 16
    %v268 = vmul.u32 %v264, %v266
    %v269 = vmul.u32 %v264, %v267
    %v270 = vmul.u32 %v265, %v266
    %v271 = vmul.u32 %v265, %v267
    %v272 = vshll.u32 %v269, 16
    %v273 = vshrl.u32 %v269, 16
    %v274 = vshll.u32 %v270, 16
    %v275 = vshrl.u32 %v270, 16
    %vm276 = vc.u32 %v268, %v272
    %v277 = vsel %vm276, 1, 0
    %v278 = vadd.s32 %v268, %v272
    %v279 = vadd.s32 %v271, %v277
    %vm280 = vc.u32 %v278, %v274
    %v281 = vsel %vm280, 1, 0
    %v282 = vadd.s32 %v278, %v274
    %v283 = vadd.s32 %v279, %v281
    %v284 = vadd.s32 %v283, %v273
    %v285 = vadd.s32 %v284, %v275
    %v286 = vmul.u32 %v241, %v232
    %v287 = vadd.s32 %v263, %v282
    %vm288 = vc.u32 %v263, %v282
    %v289 = vadd.s32 %v285, 1
    %v290 = vsel %vm288, %v289, %v285
    %v291 = vadd.s32 %v286, %v290
    %v292 = vadd.s32 %v291, 536870912
    %v293 = vshrl.u32 %v292, 30
    %v294 = vshll.u32 %v293, 30
    %v295 = vsub.s32 %v291, %v294
    %vm296 = vcmp.lt.s32.totalorder %v295, 0
    %v297 = vsub.s32 0, %v295
    %v298 = vsel %vm296, %v297, %v295
    %v299 = vclz %v298
    %v300 = vsub.s32 %v299, 2
    %vm301 = vcmp.gt.s32.totalorder 0, %v300
    %v302 = vsel %vm301, 0, %v300
    %v303 = vsub.s32 32, %v302
    %v304 = vshll.u32 %v295, %v302
    %v305 = vshrl.u32 %v287, %v303
    %v306 = vor.u32 %v304, %v305
    %v307 = vsub.s32 4294967266, %v302
    %v308 = vadd.s32 %v307, 127
    %v309 = vshll.u32 %v308, 23
    %v310 = vor.u32 4788187, %v309
    %v311 = vand.u32 2147483647, %v310
    %v313 = vcvt.s32.f32 %v306
    %v314 = vmul.f32 %v313, %v311
    %v315 = vxor.u32 %v314, 2147483648
    %v316 = vsel %vm195, %v315, %v314
    %v317 = vsub.s32 4, %v293
    %v318 = vsel %vm195, %v317, %v293
    %v319 = vsel %vm194, %v37, %v316
    %v320 = vsel %vm194, 0, %v318
    %v321 = vmul.f32 %v319, %v319
    %v322 = vmul.f32 %v321, -0.001358992
    %v323 = vadd.f32 %v322, 0.041655596
    %v324 = vmul.f32 %v321, %v323
    %v325 = vadd.f32 %v324, -0.4999988
    %v326 = vmul.f32 %v321, %v325
    %v327 = vadd.f32 1.0, %v326
    %v328 = vmul.f32 %v319, %v319
    %v329 = vmul.f32 %v328, -0.00019511016
    %v330 = vadd.f32 %v329, 0.008332121
    %v331 = vmul.f32 %v328, %v330
    %v332 = vadd.f32 %v331, -0.16666654
    %v333 = vmul.f32 %v328, %v332
    %v334 = vadd.f32 %v333, 1.0
    %v335 = vmul.f32 %v334, %v319
    %vm336 = vweird.f32 %v37
    %v337 = vand.u32 %v320, 3
    %vm338 = vcmp.lt.s32.totalorder %v337, 2
    %vm339 = vcmp.eq.s32.totalorder %v337, 0
    %v340 = vxor.u32 %v335, 2147483648
    %v341 = vsel %vm339, %v327, %v340
    %vm342 = vcmp.eq.s32.totalorder %v337, 2
    %v343 = vxor.u32 %v327, 2147483648
    %v344 = vsel %vm342, %v343, %v335
    %v345 = vsel %vm338, %v341, %v344
    %v346 = vsel %vm336, nan, %v345
    %347 = vst [vmem:[#allocation5] sm:$0xff] %v192
    %s348 = scalar_lea.vmem [#allocation5], 48
    %349 = vst [vmem:[%s348] sm:$0xff] %v346
    %v350 = vmul.f32 %v192, %v346
    %v351 = vmul.f32 %v350, 2.0
    %v352 = vmul.f32 %v346, %v346
    %v353 = vmul.f32 %v192, %v192
    %v354 = vsub.f32 %v352, %v353
    %v355 = vmul.f32 %v351, %v354
    %v356 = vmul.f32 %v355, 2.0
    %v357 = vmul.f32 %v354, %v354
    %v358 = vmul.f32 %v351, %v351
    %v359 = vsub.f32 %v357, %v358
    %s360 = scalar_lea.vmem [#allocation5], 8
    %361 = vst [vmem:[%s360] sm:$0xff] %v356
    %s362 = scalar_lea.vmem [#allocation5], 56
    %363 = vst [vmem:[%s362] sm:$0xff] %v359
    %v364 = vmul.f32 %v36, 6.7020645
    %v365 = vand.u32 2147483647, %v364
    %vm366 = vcmp.le.f32.partialorder %v365, 0.7853982
    %vm367 = vcmp.lt.s32.totalorder %v364, 0
    %v368 = vand.u32 %v364, 2139095040
    %v369 = vshrl.u32 %v368, 23
    %v370 = vsub.s32 %v369, 127
    %v371 = vand.u32 2147483647, %v364
    %v372 = vand.u32 %v371, 8388607
    %v373 = vor.u32 %v372, 8388608
    %v374 = vsub.s32 0, %v373
    %v375 = vadd.s32 %v370, 1
    %vm376 = vcmp.gt.s32.totalorder %v375, 0
    %v377 = vsel %vm376, %v375, 0
    %v378 = vshrl.u32 %v377, 5
    %v379 = vand.u32 %v377, 31
    %v380 = vsub.s32 32, %v379
    %v381 = vshrl.u32 683565275, %v380
    %v382 = vshll.u32 683565275, %v379
    %v383 = vshrl.u32 2475754826, %v380
    %v384 = vor.u32 %v382, %v383
    %v385 = vshll.u32 2475754826, %v379
    %v386 = vshrl.u32 2131351028, %v380
    %v387 = vor.u32 %v385, %v386
    %v388 = vshll.u32 2131351028, %v379
    %v389 = vshrl.u32 2102212464, %v380
    %v390 = vor.u32 %v388, %v389
    %v391 = vshll.u32 2102212464, %v379
    %v392 = vshrl.u32 920167782, %v380
    %v393 = vor.u32 %v391, %v392
    %v394 = vshll.u32 920167782, %v379
    %v395 = vshrl.u32 1326507024, %v380
    %v396 = vor.u32 %v394, %v395
    %vm397 = vcmp.lt.s32.totalorder %v378, 1
    %vm398 = vcmp.lt.s32.totalorder %v378, 2
    %vm399 = vcmp.lt.s32.totalorder %v378, 3
    %vm400 = vcmp.lt.s32.totalorder %v378, 4
    %v401 = vsel %vm397, %v381, %v384
    %v402 = vsel %vm400, %v390, 2102212464
    %v403 = vsel %vm399, %v387, %v402
    %v404 = vsel %vm398, %v401, %v403
    %v405 = vsel %vm397, %v384, %v387
    %v406 = vsel %vm400, %v393, 920167782
    %v407 = vsel %vm399, %v390, %v406
    %v408 = vsel %vm398, %v405, %v407
    %v409 = vsel %vm397, %v387, %v390
    %v410 = vsel %vm400, %v396, 1326507024
    %v411 = vsel %vm399, %v393, %v410
    %v412 = vsel %vm398, %v409, %v411
    %v413 = vshll.u32 %v373, 8
    %v414 = vand.u32 %v413, 65535
    %v415 = vshrl.u32 %v413, 16
    %v416 = vand.u32 %v412, 65535
    %v417 = vshrl.u32 %v412, 16
    %v418 = vmul.u32 %v414, %v416
    %v419 = vmul.u32 %v414, %v417
    %v420 = vmul.u32 %v415, %v416
    %v421 = vmul.u32 %v415, %v417
    %v422 = vshll.u32 %v419, 16
    %v423 = vshrl.u32 %v419, 16
    %v424 = vshll.u32 %v420, 16
    %v425 = vshrl.u32 %v420, 16
    %vm426 = vc.u32 %v418, %v422
    %v427 = vsel %vm426, 1, 0
    %v428 = vadd.s32 %v418, %v422
    %v429 = vadd.s32 %v421, %v427
    %vm430 = vc.u32 %v428, %v424
    %v431 = vsel %vm430, 1, 0
    %v432 = vadd.s32 %v428, %v424
    %v433 = vadd.s32 %v429, %v431
    %v434 = vadd.s32 %v433, %v423
    %v435 = vadd.s32 %v434, %v425
    %v436 = vand.u32 %v413, 65535
    %v437 = vshrl.u32 %v413, 16
    %v438 = vand.u32 %v408, 65535
    %v439 = vshrl.u32 %v408, 16
    %v440 = vmul.u32 %v436, %v438
    %v441 = vmul.u32 %v436, %v439
    %v442 = vmul.u32 %v437, %v438
    %v443 = vmul.u32 %v437, %v439
    %v444 = vshll.u32 %v441, 16
    %v445 = vshrl.u32 %v441, 16
    %v446 = vshll.u32 %v442, 16
    %v447 = vshrl.u32 %v442, 16
    %vm448 = vc.u32 %v440, %v444
    %v449 = vsel %vm448, 1, 0
    %v450 = vadd.s32 %v440, %v444
    %v451 = vadd.s32 %v443, %v449
    %vm452 = vc.u32 %v450, %v446
    %v453 = vsel %vm452, 1, 0
    %v454 = vadd.s32 %v450, %v446
    %v455 = vadd.s32 %v451, %v453
    %v456 = vadd.s32 %v455, %v445
    %v457 = vadd.s32 %v456, %v447
    %v458 = vmul.u32 %v413, %v404
    %v459 = vadd.s32 %v435, %v454
    %vm460 = vc.u32 %v435, %v454
    %v461 = vadd.s32 %v457, 1
    %v462 = vsel %vm460, %v461, %v457
    %v463 = vadd.s32 %v458, %v462
    %v464 = vadd.s32 %v463, 536870912
    %v465 = vshrl.u32 %v464, 30
    %v466 = vshll.u32 %v465, 30
    %v467 = vsub.s32 %v463, %v466
    %vm468 = vcmp.lt.s32.totalorder %v467, 0
    %v469 = vsub.s32 0, %v467
    %v470 = vsel %vm468, %v469, %v467
    %v471 = vclz %v470
    %v472 = vsub.s32 %v471, 2
    %vm473 = vcmp.gt.s32.totalorder 0, %v472
    %v474 = vsel %vm473, 0, %v472
    %v475 = vsub.s32 32, %v474
    %v476 = vshll.u32 %v467, %v474
    %v477 = vshrl.u32 %v459, %v475
    %v478 = vor.u32 %v476, %v477
    %v479 = vsub.s32 4294967266, %v474
    %v480 = vadd.s32 %v479, 127
    %v481 = vshll.u32 %v480, 23
    %v482 = vor.u32 4788187, %v481
    %v483 = vand.u32 2147483647, %v482
    %v485 = vcvt.s32.f32 %v478
    %v486 = vmul.f32 %v485, %v483
    %v487 = vxor.u32 %v486, 2147483648
    %v488 = vsel %vm367, %v487, %v486
    %v489 = vsub.s32 4, %v465
    %v490 = vsel %vm367, %v489, %v465
    %v491 = vsel %vm366, %v364, %v488
    %v492 = vsel %vm366, 0, %v490
    %v493 = vmul.f32 %v491, %v491
    %v494 = vmul.f32 %v493, -0.001358992
    %v495 = vadd.f32 %v494, 0.041655596
    %v496 = vmul.f32 %v493, %v495
    %v497 = vadd.f32 %v496, -0.4999988
    %v498 = vmul.f32 %v493, %v497
    %v499 = vadd.f32 1.0, %v498
    %v500 = vmul.f32 %v491, %v491
    %v501 = vmul.f32 %v500, -0.00019511016
    %v502 = vadd.f32 %v501, 0.008332121
    %v503 = vmul.f32 %v500, %v502
    %v504 = vadd.f32 %v503, -0.16666654
    %v505 = vmul.f32 %v500, %v504
    %v506 = vadd.f32 %v505, 1.0
    %v507 = vmul.f32 %v506, %v491
    %vm508 = vweird.f32 %v364
    %v509 = vadd.s32 %v492, 3
    %v510 = vand.u32 %v509, 3
    %vm511 = vcmp.lt.s32.totalorder %v510, 2
    %vm512 = vcmp.eq.s32.totalorder %v510, 0
    %v513 = vxor.u32 %v507, 2147483648
    %v514 = vsel %vm512, %v499, %v513
    %vm515 = vcmp.eq.s32.totalorder %v510, 2
    %v516 = vxor.u32 %v499, 2147483648
    %v517 = vsel %vm515, %v516, %v507
    %v518 = vsel %vm511, %v514, %v517
    %v519 = vsel %vm508, nan, %v518
    %v520 = vand.u32 2147483647, %v364
    %vm521 = vcmp.le.f32.partialorder %v520, 0.7853982
    %vm522 = vcmp.lt.s32.totalorder %v364, 0
    %v523 = vand.u32 %v364, 2139095040
    %v524 = vshrl.u32 %v523, 23
    %v525 = vsub.s32 %v524, 127
    %v526 = vand.u32 2147483647, %v364
    %v527 = vand.u32 %v526, 8388607
    %v528 = vor.u32 %v527, 8388608
    %v529 = vsub.s32 0, %v528
    %v530 = vadd.s32 %v525, 1
    %vm531 = vcmp.gt.s32.totalorder %v530, 0
    %v532 = vsel %vm531, %v530, 0
    %v533 = vshrl.u32 %v532, 5
    %v534 = vand.u32 %v532, 31
    %v535 = vsub.s32 32, %v534
    %v536 = vshrl.u32 683565275, %v535
    %v537 = vshll.u32 683565275, %v534
    %v538 = vshrl.u32 2475754826, %v535
    %v539 = vor.u32 %v537, %v538
    %v540 = vshll.u32 2475754826, %v534
    %v541 = vshrl.u32 2131351028, %v535
    %v542 = vor.u32 %v540, %v541
    %v543 = vshll.u32 2131351028, %v534
    %v544 = vshrl.u32 2102212464, %v535
    %v545 = vor.u32 %v543, %v544
    %v546 = vshll.u32 2102212464, %v534
    %v547 = vshrl.u32 920167782, %v535
    %v548 = vor.u32 %v546, %v547
    %v549 = vshll.u32 920167782, %v534
    %v550 = vshrl.u32 1326507024, %v535
    %v551 = vor.u32 %v549, %v550
    %vm552 = vcmp.lt.s32.totalorder %v533, 1
    %vm553 = vcmp.lt.s32.totalorder %v533, 2
    %vm554 = vcmp.lt.s32.totalorder %v533, 3
    %vm555 = vcmp.lt.s32.totalorder %v533, 4
    %v556 = vsel %vm552, %v536, %v539
    %v557 = vsel %vm555, %v545, 2102212464
    %v558 = vsel %vm554, %v542, %v557
    %v559 = vsel %vm553, %v556, %v558
    %v560 = vsel %vm552, %v539, %v542
    %v561 = vsel %vm555, %v548, 920167782
    %v562 = vsel %vm554, %v545, %v561
    %v563 = vsel %vm553, %v560, %v562
    %v564 = vsel %vm552, %v542, %v545
    %v565 = vsel %vm555, %v551, 1326507024
    %v566 = vsel %vm554, %v548, %v565
    %v567 = vsel %vm553, %v564, %v566
    %v568 = vshll.u32 %v528, 8
    %v569 = vand.u32 %v568, 65535
    %v570 = vshrl.u32 %v568, 16
    %v571 = vand.u32 %v567, 65535
    %v572 = vshrl.u32 %v567, 16
    %v573 = vmul.u32 %v569, %v571
    %v574 = vmul.u32 %v569, %v572
    %v575 = vmul.u32 %v570, %v571
    %v576 = vmul.u32 %v570, %v572
    %v577 = vshll.u32 %v574, 16
    %v578 = vshrl.u32 %v574, 16
    %v579 = vshll.u32 %v575, 16
    %v580 = vshrl.u32 %v575, 16
    %vm581 = vc.u32 %v573, %v577
    %v582 = vsel %vm581, 1, 0
    %v583 = vadd.s32 %v573, %v577
    %v584 = vadd.s32 %v576, %v582
    %vm585 = vc.u32 %v583, %v579
    %v586 = vsel %vm585, 1, 0
    %v587 = vadd.s32 %v583, %v579
    %v588 = vadd.s32 %v584, %v586
    %v589 = vadd.s32 %v588, %v578
    %v590 = vadd.s32 %v589, %v580
    %v591 = vand.u32 %v568, 65535
    %v592 = vshrl.u32 %v568, 16
    %v593 = vand.u32 %v563, 65535
    %v594 = vshrl.u32 %v563, 16
    %v595 = vmul.u32 %v591, %v593
    %v596 = vmul.u32 %v591, %v594
    %v597 = vmul.u32 %v592, %v593
    %v598 = vmul.u32 %v592, %v594
    %v599 = vshll.u32 %v596, 16
    %v600 = vshrl.u32 %v596, 16
    %v601 = vshll.u32 %v597, 16
    %v602 = vshrl.u32 %v597, 16
    %vm603 = vc.u32 %v595, %v599
    %v604 = vsel %vm603, 1, 0
    %v605 = vadd.s32 %v595, %v599
    %v606 = vadd.s32 %v598, %v604
    %vm607 = vc.u32 %v605, %v601
    %v608 = vsel %vm607, 1, 0
    %v609 = vadd.s32 %v605, %v601
    %v610 = vadd.s32 %v606, %v608
    %v611 = vadd.s32 %v610, %v600
    %v612 = vadd.s32 %v611, %v602
    %v613 = vmul.u32 %v568, %v559
    %v614 = vadd.s32 %v590, %v609
    %vm615 = vc.u32 %v590, %v609
    %v616 = vadd.s32 %v612, 1
    %v617 = vsel %vm615, %v616, %v612
    %v618 = vadd.s32 %v613, %v617
    %v619 = vadd.s32 %v618, 536870912
    %v620 = vshrl.u32 %v619, 30
    %v621 = vshll.u32 %v620, 30
    %v622 = vsub.s32 %v618, %v621
    %vm623 = vcmp.lt.s32.totalorder %v622, 0
    %v624 = vsub.s32 0, %v622
    %v625 = vsel %vm623, %v624, %v622
    %v626 = vclz %v625
    %v627 = vsub.s32 %v626, 2
    %vm628 = vcmp.gt.s32.totalorder 0, %v627
    %v629 = vsel %vm628, 0, %v627
    %v630 = vsub.s32 32, %v629
    %v631 = vshll.u32 %v622, %v629
    %v632 = vshrl.u32 %v614, %v630
    %v633 = vor.u32 %v631, %v632
    %v634 = vsub.s32 4294967266, %v629
    %v635 = vadd.s32 %v634, 127
    %v636 = vshll.u32 %v635, 23
    %v637 = vor.u32 4788187, %v636
    %v638 = vand.u32 2147483647, %v637
    %v640 = vcvt.s32.f32 %v633
    %v641 = vmul.f32 %v640, %v638
    %v642 = vxor.u32 %v641, 2147483648
    %v643 = vsel %vm522, %v642, %v641
    %v644 = vsub.s32 4, %v620
    %v645 = vsel %vm522, %v644, %v620
    %v646 = vsel %vm521, %v364, %v643
    %v647 = vsel %vm521, 0, %v645
    %v648 = vmul.f32 %v646, %v646
    %v649 = vmul.f32 %v648, -0.001358992
    %v650 = vadd.f32 %v649, 0.041655596
    %v651 = vmul.f32 %v648, %v650
    %v652 = vadd.f32 %v651, -0.4999988
    %v653 = vmul.f32 %v648, %v652
    %v654 = vadd.f32 1.0, %v653
    %v655 = vmul.f32 %v646, %v646
    %v656 = vmul.f32 %v655, -0.00019511016
    %v657 = vadd.f32 %v656, 0.008332121
    %v658 = vmul.f32 %v655, %v657
    %v659 = vadd.f32 %v658, -0.16666654
    %v660 = vmul.f32 %v655, %v659
    %v661 = vadd.f32 %v660, 1.0
    %v662 = vmul.f32 %v661, %v646
    %vm663 = vweird.f32 %v364
    %v664 = vand.u32 %v647, 3
    %vm665 = vcmp.lt.s32.totalorder %v664, 2
    %vm666 = vcmp.eq.s32.totalorder %v664, 0
    %v667 = vxor.u32 %v662, 2147483648
    %v668 = vsel %vm666, %v654, %v667
    %vm669 = vcmp.eq.s32.totalorder %v664, 2
    %v670 = vxor.u32 %v654, 2147483648
    %v671 = vsel %vm669, %v670, %v662
    %v672 = vsel %vm665, %v668, %v671
    %v673 = vsel %vm663, nan, %v672
    %s674 = scalar_lea.vmem [#allocation5], 16
    %675 = vst [vmem:[%s674] sm:$0xff] %v519
    %s676 = scalar_lea.vmem [#allocation5], 64
    %677 = vst [vmem:[%s676] sm:$0xff] %v673
    %v678 = vmul.f32 %v519, %v673
    %v679 = vmul.f32 %v678, 2.0
    %v680 = vmul.f32 %v673, %v673
    %v681 = vmul.f32 %v519, %v519
    %v682 = vsub.f32 %v680, %v681
    %v683 = vmul.f32 %v679, %v682
    %v684 = vmul.f32 %v683, 2.0
    %v685 = vmul.f32 %v682, %v682
    %v686 = vmul.f32 %v679, %v679
    %v687 = vsub.f32 %v685, %v686
    %s688 = scalar_lea.vmem [#allocation5], 24
    %689 = vst [vmem:[%s688] sm:$0xff] %v684
    %s690 = scalar_lea.vmem [#allocation5], 72
    %691 = vst [vmem:[%s690] sm:$0xff] %v687
    %v692 = vmul.f32 %v36, 107.23303
    %v693 = vand.u32 2147483647, %v692
    %vm694 = vcmp.le.f32.partialorder %v693, 0.7853982
    %vm695 = vcmp.lt.s32.totalorder %v692, 0
    %v696 = vand.u32 %v692, 2139095040
    %v697 = vshrl.u32 %v696, 23
    %v698 = vsub.s32 %v697, 127
    %v699 = vand.u32 2147483647, %v692
    %v700 = vand.u32 %v699, 8388607
    %v701 = vor.u32 %v700, 8388608
    %v702 = vsub.s32 0, %v701
    %v703 = vadd.s32 %v698, 1
    %vm704 = vcmp.gt.s32.totalorder %v703, 0
    %v705 = vsel %vm704, %v703, 0
    %v706 = vshrl.u32 %v705, 5
    %v707 = vand.u32 %v705, 31
    %v708 = vsub.s32 32, %v707
    %v709 = vshrl.u32 683565275, %v708
    %v710 = vshll.u32 683565275, %v707
    %v711 = vshrl.u32 2475754826, %v708
    %v712 = vor.u32 %v710, %v711
    %v713 = vshll.u32 2475754826, %v707
    %v714 = vshrl.u32 2131351028, %v708
    %v715 = vor.u32 %v713, %v714
    %v716 = vshll.u32 2131351028, %v707
    %v717 = vshrl.u32 2102212464, %v708
    %v718 = vor.u32 %v716, %v717
    %v719 = vshll.u32 2102212464, %v707
    %v720 = vshrl.u32 920167782, %v708
    %v721 = vor.u32 %v719, %v720
    %v722 = vshll.u32 920167782, %v707
    %v723 = vshrl.u32 1326507024, %v708
    %v724 = vor.u32 %v722, %v723
    %vm725 = vcmp.lt.s32.totalorder %v706, 1
    %vm726 = vcmp.lt.s32.totalorder %v706, 2
    %vm727 = vcmp.lt.s32.totalorder %v706, 3
    %vm728 = vcmp.lt.s32.totalorder %v706, 4
    %v729 = vsel %vm725, %v709, %v712
    %v730 = vsel %vm728, %v718, 2102212464
    %v731 = vsel %vm727, %v715, %v730
    %v732 = vsel %vm726, %v729, %v731
    %v733 = vsel %vm725, %v712, %v715
    %v734 = vsel %vm728, %v721, 920167782
    %v735 = vsel %vm727, %v718, %v734
    %v736 = vsel %vm726, %v733, %v735
    %v737 = vsel %vm725, %v715, %v718
    %v738 = vsel %vm728, %v724, 1326507024
    %v739 = vsel %vm727, %v721, %v738
    %v740 = vsel %vm726, %v737, %v739
    %v741 = vshll.u32 %v701, 8
    %v742 = vand.u32 %v741, 65535
    %v743 = vshrl.u32 %v741, 16
    %v744 = vand.u32 %v740, 65535
    %v745 = vshrl.u32 %v740, 16
    %v746 = vmul.u32 %v742, %v744
    %v747 = vmul.u32 %v742, %v745
    %v748 = vmul.u32 %v743, %v744
    %v749 = vmul.u32 %v743, %v745
    %v750 = vshll.u32 %v747, 16
    %v751 = vshrl.u32 %v747, 16
    %v752 = vshll.u32 %v748, 16
    %v753 = vshrl.u32 %v748, 16
    %vm754 = vc.u32 %v746, %v750
    %v755 = vsel %vm754, 1, 0
    %v756 = vadd.s32 %v746, %v750
    %v757 = vadd.s32 %v749, %v755
    %vm758 = vc.u32 %v756, %v752
    %v759 = vsel %vm758, 1, 0
    %v760 = vadd.s32 %v756, %v752
    %v761 = vadd.s32 %v757, %v759
    %v762 = vadd.s32 %v761, %v751
    %v763 = vadd.s32 %v762, %v753
    %v764 = vand.u32 %v741, 65535
    %v765 = vshrl.u32 %v741, 16
    %v766 = vand.u32 %v736, 65535
    %v767 = vshrl.u32 %v736, 16
    %v768 = vmul.u32 %v764, %v766
    %v769 = vmul.u32 %v764, %v767
    %v770 = vmul.u32 %v765, %v766
    %v771 = vmul.u32 %v765, %v767
    %v772 = vshll.u32 %v769, 16
    %v773 = vshrl.u32 %v769, 16
    %v774 = vshll.u32 %v770, 16
    %v775 = vshrl.u32 %v770, 16
    %vm776 = vc.u32 %v768, %v772
    %v777 = vsel %vm776, 1, 0
    %v778 = vadd.s32 %v768, %v772
    %v779 = vadd.s32 %v771, %v777
    %vm780 = vc.u32 %v778, %v774
    %v781 = vsel %vm780, 1, 0
    %v782 = vadd.s32 %v778, %v774
    %v783 = vadd.s32 %v779, %v781
    %v784 = vadd.s32 %v783, %v773
    %v785 = vadd.s32 %v784, %v775
    %v786 = vmul.u32 %v741, %v732
    %v787 = vadd.s32 %v763, %v782
    %vm788 = vc.u32 %v763, %v782
    %v789 = vadd.s32 %v785, 1
    %v790 = vsel %vm788, %v789, %v785
    %v791 = vadd.s32 %v786, %v790
    %v792 = vadd.s32 %v791, 536870912
    %v793 = vshrl.u32 %v792, 30
    %v794 = vshll.u32 %v793, 30
    %v795 = vsub.s32 %v791, %v794
    %vm796 = vcmp.lt.s32.totalorder %v795, 0
    %v797 = vsub.s32 0, %v795
    %v798 = vsel %vm796, %v797, %v795
    %v799 = vclz %v798
    %v800 = vsub.s32 %v799, 2
    %vm801 = vcmp.gt.s32.totalorder 0, %v800
    %v802 = vsel %vm801, 0, %v800
    %v803 = vsub.s32 32, %v802
    %v804 = vshll.u32 %v795, %v802
    %v805 = vshrl.u32 %v787, %v803
    %v806 = vor.u32 %v804, %v805
    %v807 = vsub.s32 4294967266, %v802
    %v808 = vadd.s32 %v807, 127
    %v809 = vshll.u32 %v808, 23
    %v810 = vor.u32 4788187, %v809
    %v811 = vand.u32 2147483647, %v810
    %v813 = vcvt.s32.f32 %v806
    %v814 = vmul.f32 %v813, %v811
    %v815 = vxor.u32 %v814, 2147483648
    %v816 = vsel %vm695, %v815, %v814
    %v817 = vsub.s32 4, %v793
    %v818 = vsel %vm695, %v817, %v793
    %v819 = vsel %vm694, %v692, %v816
    %v820 = vsel %vm694, 0, %v818
    %v821 = vmul.f32 %v819, %v819
    %v822 = vmul.f32 %v821, -0.001358992
    %v823 = vadd.f32 %v822, 0.041655596
    %v824 = vmul.f32 %v821, %v823
    %v825 = vadd.f32 %v824, -0.4999988
    %v826 = vmul.f32 %v821, %v825
    %v827 = vadd.f32 1.0, %v826
    %v828 = vmul.f32 %v819, %v819
    %v829 = vmul.f32 %v828, -0.00019511016
    %v830 = vadd.f32 %v829, 0.008332121
    %v831 = vmul.f32 %v828, %v830
    %v832 = vadd.f32 %v831, -0.16666654
    %v833 = vmul.f32 %v828, %v832
    %v834 = vadd.f32 %v833, 1.0
    %v835 = vmul.f32 %v834, %v819
    %vm836 = vweird.f32 %v692
    %v837 = vadd.s32 %v820, 3
    %v838 = vand.u32 %v837, 3
    %vm839 = vcmp.lt.s32.totalorder %v838, 2
    %vm840 = vcmp.eq.s32.totalorder %v838, 0
    %v841 = vxor.u32 %v835, 2147483648
    %v842 = vsel %vm840, %v827, %v841
    %vm843 = vcmp.eq.s32.totalorder %v838, 2
    %v844 = vxor.u32 %v827, 2147483648
    %v845 = vsel %vm843, %v844, %v835
    %v846 = vsel %vm839, %v842, %v845
    %v847 = vsel %vm836, nan, %v846
    %v848 = vand.u32 2147483647, %v692
    %vm849 = vcmp.le.f32.partialorder %v848, 0.7853982
    %vm850 = vcmp.lt.s32.totalorder %v692, 0
    %v851 = vand.u32 %v692, 2139095040
    %v852 = vshrl.u32 %v851, 23
    %v853 = vsub.s32 %v852, 127
    %v854 = vand.u32 2147483647, %v692
    %v855 = vand.u32 %v854, 8388607
    %v856 = vor.u32 %v855, 8388608
    %v857 = vsub.s32 0, %v856
    %v858 = vadd.s32 %v853, 1
    %vm859 = vcmp.gt.s32.totalorder %v858, 0
    %v860 = vsel %vm859, %v858, 0
    %v861 = vshrl.u32 %v860, 5
    %v862 = vand.u32 %v860, 31
    %v863 = vsub.s32 32, %v862
    %v864 = vshrl.u32 683565275, %v863
    %v865 = vshll.u32 683565275, %v862
    %v866 = vshrl.u32 2475754826, %v863
    %v867 = vor.u32 %v865, %v866
    %v868 = vshll.u32 2475754826, %v862
    %v869 = vshrl.u32 2131351028, %v863
    %v870 = vor.u32 %v868, %v869
    %v871 = vshll.u32 2131351028, %v862
    %v872 = vshrl.u32 2102212464, %v863
    %v873 = vor.u32 %v871, %v872
    %v874 = vshll.u32 2102212464, %v862
    %v875 = vshrl.u32 920167782, %v863
    %v876 = vor.u32 %v874, %v875
    %v877 = vshll.u32 920167782, %v862
    %v878 = vshrl.u32 1326507024, %v863
    %v879 = vor.u32 %v877, %v878
    %vm880 = vcmp.lt.s32.totalorder %v861, 1
    %vm881 = vcmp.lt.s32.totalorder %v861, 2
    %vm882 = vcmp.lt.s32.totalorder %v861, 3
    %vm883 = vcmp.lt.s32.totalorder %v861, 4
    %v884 = vsel %vm880, %v864, %v867
    %v885 = vsel %vm883, %v873, 2102212464
    %v886 = vsel %vm882, %v870, %v885
    %v887 = vsel %vm881, %v884, %v886
    %v888 = vsel %vm880, %v867, %v870
    %v889 = vsel %vm883, %v876, 920167782
    %v890 = vsel %vm882, %v873, %v889
    %v891 = vsel %vm881, %v888, %v890
    %v892 = vsel %vm880, %v870, %v873
    %v893 = vsel %vm883, %v879, 1326507024
    %v894 = vsel %vm882, %v876, %v893
    %v895 = vsel %vm881, %v892, %v894
    %v896 = vshll.u32 %v856, 8
    %v897 = vand.u32 %v896, 65535
    %v898 = vshrl.u32 %v896, 16
    %v899 = vand.u32 %v895, 65535
    %v900 = vshrl.u32 %v895, 16
    %v901 = vmul.u32 %v897, %v899
    %v902 = vmul.u32 %v897, %v900
    %v903 = vmul.u32 %v898, %v899
    %v904 = vmul.u32 %v898, %v900
    %v905 = vshll.u32 %v902, 16
    %v906 = vshrl.u32 %v902, 16
    %v907 = vshll.u32 %v903, 16
    %v908 = vshrl.u32 %v903, 16
    %vm909 = vc.u32 %v901, %v905
    %v910 = vsel %vm909, 1, 0
    %v911 = vadd.s32 %v901, %v905
    %v912 = vadd.s32 %v904, %v910
    %vm913 = vc.u32 %v911, %v907
    %v914 = vsel %vm913, 1, 0
    %v915 = vadd.s32 %v911, %v907
    %v916 = vadd.s32 %v912, %v914
    %v917 = vadd.s32 %v916, %v906
    %v918 = vadd.s32 %v917, %v908
    %v919 = vand.u32 %v896, 65535
    %v920 = vshrl.u32 %v896, 16
    %v921 = vand.u32 %v891, 65535
    %v922 = vshrl.u32 %v891, 16
    %v923 = vmul.u32 %v919, %v921
    %v924 = vmul.u32 %v919, %v922
    %v925 = vmul.u32 %v920, %v921
    %v926 = vmul.u32 %v920, %v922
    %v927 = vshll.u32 %v924, 16
    %v928 = vshrl.u32 %v924, 16
    %v929 = vshll.u32 %v925, 16
    %v930 = vshrl.u32 %v925, 16
    %vm931 = vc.u32 %v923, %v927
    %v932 = vsel %vm931, 1, 0
    %v933 = vadd.s32 %v923, %v927
    %v934 = vadd.s32 %v926, %v932
    %vm935 = vc.u32 %v933, %v929
    %v936 = vsel %vm935, 1, 0
    %v937 = vadd.s32 %v933, %v929
    %v938 = vadd.s32 %v934, %v936
    %v939 = vadd.s32 %v938, %v928
    %v940 = vadd.s32 %v939, %v930
    %v941 = vmul.u32 %v896, %v887
    %v942 = vadd.s32 %v918, %v937
    %vm943 = vc.u32 %v918, %v937
    %v944 = vadd.s32 %v940, 1
    %v945 = vsel %vm943, %v944, %v940
    %v946 = vadd.s32 %v941, %v945
    %v947 = vadd.s32 %v946, 536870912
    %v948 = vshrl.u32 %v947, 30
    %v949 = vshll.u32 %v948, 30
    %v950 = vsub.s32 %v946, %v949
    %vm951 = vcmp.lt.s32.totalorder %v950, 0
    %v952 = vsub.s32 0, %v950
    %v953 = vsel %vm951, %v952, %v950
    %v954 = vclz %v953
    %v955 = vsub.s32 %v954, 2
    %vm956 = vcmp.gt.s32.totalorder 0, %v955
    %v957 = vsel %vm956, 0, %v955
    %v958 = vsub.s32 32, %v957
    %v959 = vshll.u32 %v950, %v957
    %v960 = vshrl.u32 %v942, %v958
    %v961 = vor.u32 %v959, %v960
    %v962 = vsub.s32 4294967266, %v957
    %v963 = vadd.s32 %v962, 127
    %v964 = vshll.u32 %v963, 23
    %v965 = vor.u32 4788187, %v964
    %v966 = vand.u32 2147483647, %v965
    %v968 = vcvt.s32.f32 %v961
    %v969 = vmul.f32 %v968, %v966
    %v970 = vxor.u32 %v969, 2147483648
    %v971 = vsel %vm850, %v970, %v969
    %v972 = vsub.s32 4, %v948
    %v973 = vsel %vm850, %v972, %v948
    %v974 = vsel %vm849, %v692, %v971
    %v975 = vsel %vm849, 0, %v973
    %v976 = vmul.f32 %v974, %v974
    %v977 = vmul.f32 %v976, -0.001358992
    %v978 = vadd.f32 %v977, 0.041655596
    %v979 = vmul.f32 %v976, %v978
    %v980 = vadd.f32 %v979, -0.4999988
    %v981 = vmul.f32 %v976, %v980
    %v982 = vadd.f32 1.0, %v981
    %v983 = vmul.f32 %v974, %v974
    %v984 = vmul.f32 %v983, -0.00019511016
    %v985 = vadd.f32 %v984, 0.008332121
    %v986 = vmul.f32 %v983, %v985
    %v987 = vadd.f32 %v986, -0.16666654
    %v988 = vmul.f32 %v983, %v987
    %v989 = vadd.f32 %v988, 1.0
    %v990 = vmul.f32 %v989, %v974
    %vm991 = vweird.f32 %v692
    %v992 = vand.u32 %v975, 3
    %vm993 = vcmp.lt.s32.totalorder %v992, 2
    %vm994 = vcmp.eq.s32.totalorder %v992, 0
    %v995 = vxor.u32 %v990, 2147483648
    %v996 = vsel %vm994, %v982, %v995
    %vm997 = vcmp.eq.s32.totalorder %v992, 2
    %v998 = vxor.u32 %v982, 2147483648
    %v999 = vsel %vm997, %v998, %v990
    %v1000 = vsel %vm993, %v996, %v999
    %v1001 = vsel %vm991, nan, %v1000
    %s1002 = scalar_lea.vmem [#allocation5], 32
    %1003 = vst [vmem:[%s1002] sm:$0xff] %v847
    %s1004 = scalar_lea.vmem [#allocation5], 80
    %1005 = vst [vmem:[%s1004] sm:$0xff] %v1001
    %v1006 = vmul.f32 %v847, %v1001
    %v1007 = vmul.f32 %v1006, 2.0
    %v1008 = vmul.f32 %v1001, %v1001
    %v1009 = vmul.f32 %v847, %v847
    %v1010 = vsub.f32 %v1008, %v1009
    %v1011 = vmul.f32 %v1007, %v1010
    %v1012 = vmul.f32 %v1011, 2.0
    %v1013 = vmul.f32 %v1010, %v1010
    %v1014 = vmul.f32 %v1007, %v1007
    %v1015 = vsub.f32 %v1013, %v1014
    %s1016 = scalar_lea.vmem [#allocation5], 40
    %1017 = vst [vmem:[%s1016] sm:$0xff] %v1012
    %s1018 = scalar_lea.vmem [#allocation5], 88
    %1019 = vst [vmem:[%s1018] sm:$0xff] %v1015
    // Predicated region
    $region10: #{tpu_custom_call.1} parent=1 // pred_check
      _
    $region11: #{tpu_custom_call.1} parent=1 // pred_check_branch
      %1021 = sbr.rel (0) target = $region13
    $region12: #{tpu_custom_call.1} parent=1 // pred_region
      %1023 = vsyncadd [#allocation4], 0
      %s1024 = sshll.u32 [#allocation5], 4
      %s1025 = int_to_ptr.vmem [resolvable:$true] %s1024
      %s1026 = sshll.u32 %s1, 4
      %s1027 = int_to_ptr.hbm [resolvable:$true] %s1026
      %1032 = dma.vmem_to_hbm [thread:$0]  %s1025, 1536, %s1027, [#allocation4], 128, 128, 8
    $region13: #{tpu_custom_call.1} parent=1 // pred_fallthru
      _
    // Predicated region
    $region14: #{tpu_custom_call.1} parent=1 // pred_check
      _
    $region15: #{tpu_custom_call.1} parent=1 // pred_check_branch
      %1034 = sbr.rel (0) target = $region17
    $region16: #{tpu_custom_call.1} parent=1 // pred_region
      %1036 = dma.done [#allocation4], 1536
    $region17: #{tpu_custom_call.1} parent=1 // pred_fallthru
      _
    %1037 = vsyncpa [#allocation3], 1
    %1038 = vsyncpa [#allocation4], 1

</llo_original>
